<compile_context>
chip_gen: v7x
topology: tpu7x:2x2x1
jax: 0.10.0
libtpu: 0.0.40
codegen_flags: <defaults>
</compile_context>

<pallas_src>
import jax
import jax.numpy as jnp
from jax.experimental import pallas as pl
from jax.experimental.pallas import tpu as pltpu


def _gather_kernel(fwd_ref, x_ref, o_ref):
    # fwd_ref: SMEM (B_total * remain_T,) int32 -- flattened kept forward indexes,
    #          fwd_ref[b_global * remain_T + t] = source T-row for output row t of column b.
    # x_ref:   VMEM (T, bblk, C)                -- this grid step's batch chunk of patches.
    # o_ref:   VMEM (remain_T, bblk, C)         -- gathered (shuffled & masked) patches.
    remain_t, bblk, _ = o_ref.shape
    base = pl.program_id(0) * bblk          # first global batch column of this chunk
    unroll = True if remain_t <= 16 else 8  # keep code size bounded for big T

    for b in range(bblk):                   # static outer loop over batch columns
        idx_base = (base + b) * remain_t    # hoisted per-column scalar (SMEM index base)

        def body(t, carry, b=b, idx_base=idx_base):
            src_t = fwd_ref[idx_base + t]   # scalar read from SMEM
            # Direct single-sublane row copy: dynamic offset only on the untiled leading
            # axis, static sublane index -> no cross-lane/sublane movement, no selects.
            o_ref[pl.ds(t, 1), pl.ds(b, 1), :] = x_ref[pl.ds(src_t, 1), pl.ds(b, 1), :]
            return carry

        jax.lax.fori_loop(0, remain_t, body, 0, unroll=unroll)


def _choose_bblk(B, T, remain_T, C, dtype, budget_bytes=12 * 1024 * 1024):
    """Pick the batch-chunk size (and any batch padding) for the grid.

    Returns (bblk, b_pad). The double-buffered in+out footprint of one grid step is
    kept under `budget_bytes`; bblk is a multiple of the dtype's minimum sublane tile
    (8 for 4-byte, 16 for 2-byte, 32 for 1-byte dtypes) or equals the (possibly padded)
    full batch dimension.
    """
    itemsize = jnp.dtype(dtype).itemsize
    align = {4: 8, 2: 16, 1: 32}.get(itemsize, 8)

    def fits(b):
        return 2 * b * (T + remain_T) * C * itemsize <= budget_bytes  # 2x = double-buffered

    aligned = sorted((b for b in range(align, B + 1, align) if B % b == 0), reverse=True)
    fitting = [b for b in aligned if fits(b)]
    if fitting:
        # Prefer >= 2 grid steps so both v7x TensorCores get work on the parallel axis.
        multi = [b for b in fitting if B // b >= 2]
        return (multi[0] if multi else fitting[0]), 0
    if aligned:
        return aligned[-1], 0   # smallest aligned chunk; soft budget may be exceeded
    # B is not a multiple of `align`: a single full-B block is still a legal tile
    # (block dim == array dim) -- take it if it fits the budget, otherwise pad B.
    if fits(B):
        return B, 0
    return align, (-B) % align


def _patch_shuffle_impl(patches: jax.Array, ratio: float, key: jax.Array):
    """Pallas implementation of PatchShuffle.forward.

    patches: (T, B, C). Returns (shuffled: (remain_T, B, C),
    forward_indexes: (T, B) int32, backward_indexes: (T, B) int32).
    """
    T, B, C = patches.shape
    # NOTE: int() truncation on purpose -- matches the PyTorch `int(T * (1 - ratio))`.
    remain_T = int(T * (1 - ratio))

    # Per-batch random permutations (replaces host-side np.random.shuffle), vmapped.
    keys = jax.random.split(key, B)
    fwd = jax.vmap(lambda k: jax.random.permutation(k, T))(keys).astype(jnp.int32)  # (B, T)
    # Inverse permutation via an O(T) scatter of iota (cheaper than argsort).
    iota = jnp.broadcast_to(jnp.arange(T, dtype=jnp.int32), (B, T))
    bwd = jnp.zeros_like(fwd).at[jnp.arange(B)[:, None], fwd].set(iota)              # (B, T)

    if remain_T == 0:
        # ratio -> 1.0: nothing is kept; avoid a zero-size output block / grid.
        return jnp.zeros((0, B, C), dtype=patches.dtype), fwd.T, bwd.T

    bblk, b_pad = _choose_bblk(B, T, remain_T, C, patches.dtype)
    if b_pad:
        # Pad the batch axis up to the dtype sublane alignment; padded columns use
        # identity indexes and are sliced off after the kernel.
        patches_k = jnp.pad(patches, ((0, 0), (0, b_pad), (0, 0)))
        fwd_k = jnp.concatenate(
            [fwd, jnp.broadcast_to(jnp.arange(T, dtype=jnp.int32), (b_pad, T))], axis=0)
        B_k = B + b_pad
    else:
        patches_k, fwd_k, B_k = patches, fwd, B

    # Flatten kept indexes to 1-D so SMEM padding stays tiny.
    fwd_keep = fwd_k[:, :remain_T].reshape(-1)  # (B_k * remain_T,) int32

    shuffled = pl.pallas_call(
        _gather_kernel,
        out_shape=jax.ShapeDtypeStruct((remain_T, B_k, C), patches.dtype),
        grid_spec=pltpu.PrefetchScalarGridSpec(
            num_scalar_prefetch=1,
            grid=(B_k // bblk,),
            in_specs=[pl.BlockSpec((T, bblk, C), lambda bc, fwd_s: (0, bc, 0))],
            out_specs=pl.BlockSpec((remain_T, bblk, C), lambda bc, fwd_s: (0, bc, 0)),
        ),
        compiler_params=pltpu.CompilerParams(
            dimension_semantics=("parallel",),
            vmem_limit_bytes=32 * 1024 * 1024,
        ),
    )(fwd_keep, patches_k)

    if b_pad:
        shuffled = shuffled[:, :B, :]

    # Module convention: index tensors are (T, B); these transposes touch only T*B int32s.
    return shuffled, fwd.T, bwd.T


patch_shuffle = jax.jit(_patch_shuffle_impl, static_argnums=(1,))


if __name__ == "__main__":
    key = jax.random.PRNGKey(0)
    k_data, k_perm = jax.random.split(key)

    # Small shapes consistent with the module: T patches, B batch, C channels.
    T, B, C = 16, 2, 32
    ratio = 0.75  # remain_T = int(16 * 0.25) = 4

    patches = jax.random.normal(k_data, (T, B, C), dtype=jnp.float32)

    shuffled, fwd_idx, bwd_idx = patch_shuffle(patches, ratio, k_perm)
    shuffled = jax.block_until_ready(shuffled)

    # Reference check (plain JAX gather, same semantics as take_indexes + slice).
    remain_T = int(T * (1 - ratio))
    ref = jnp.take_along_axis(
        patches, fwd_idx[:, :, None].astype(jnp.int32), axis=0
    )[:remain_T]
    assert shuffled.shape == (remain_T, B, C)
    assert fwd_idx.shape == (T, B) and bwd_idx.shape == (T, B)
    assert jnp.allclose(shuffled, ref, atol=0.0, rtol=0.0)
    # backward_indexes really inverts forward_indexes.
    assert jnp.all(
        jnp.take_along_axis(fwd_idx, bwd_idx, axis=0)
        == jnp.arange(T, dtype=jnp.int32)[:, None]
    )

    print("KERNEL_OK")
</pallas_src>

<mosaic_0001>
module attributes {stable_mosaic.version = 11 : i64} {
  func.func @_gather_kernel(%arg0: i32, %arg1: memref<8xi32, #tpu.memory_space<smem>>, %arg2: memref<16x2x32xf32, #tpu.memory_space<vmem>>, %arg3: memref<4x2x32xf32, #tpu.memory_space<vmem>>) attributes {dimension_semantics = [#tpu.dimension_semantics<parallel>], iteration_bounds = array<i64: 1>, scalar_prefetch = 1 : i64, scratch_operands = 0 : i64, tpu.core_type = #tpu.core_type<tc>, window_params = [{transform_indices = @transform_0, window_bounds = array<i64: 16, 2, 32>}, {transform_indices = @transform_1, window_bounds = array<i64: 4, 2, 32>}]} {
    %c2_i32 = arith.constant 2 : i32
    %0 = arith.muli %arg0, %c2_i32 : i32
    %c0_i32 = arith.constant 0 : i32
    %1 = arith.addi %0, %c0_i32 : i32
    %c4_i32 = arith.constant 4 : i32
    %2 = arith.muli %1, %c4_i32 : i32
    %c0_i32_0 = arith.constant 0 : i32
    %3 = arith.addi %2, %c0_i32_0 : i32
    %4 = arith.index_cast %3 : i32 to index
    %5 = memref.load %arg1[%4] : memref<8xi32, #tpu.memory_space<smem>>
    %6 = arith.index_cast %5 : i32 to index
    %c0 = arith.constant 0 : index
    %c0_1 = arith.constant 0 : index
    %7 = vector.load %arg2[%6, %c0, %c0_1] : memref<16x2x32xf32, #tpu.memory_space<vmem>>, vector<1x1x32xf32>
    %8 = arith.index_cast %c0_i32_0 : i32 to index
    %c0_2 = arith.constant 0 : index
    %c0_3 = arith.constant 0 : index
    %9 = vector.load %arg3[%8, %c0_2, %c0_3] : memref<4x2x32xf32, #tpu.memory_space<vmem>>, vector<1x1x32xf32>
    tpu.vector_store %arg3[%8, %c0_2, %c0_3], %7 {strides = array<i32>} : memref<4x2x32xf32, #tpu.memory_space<vmem>>, vector<1x1x32xf32>,
    %c1_i32 = arith.constant 1 : i32
    %10 = arith.addi %2, %c1_i32 : i32
    %11 = arith.index_cast %10 : i32 to index
    %12 = memref.load %arg1[%11] : memref<8xi32, #tpu.memory_space<smem>>
    %13 = arith.index_cast %12 : i32 to index
    %c0_4 = arith.constant 0 : index
    %c0_5 = arith.constant 0 : index
    %14 = vector.load %arg2[%13, %c0_4, %c0_5] : memref<16x2x32xf32, #tpu.memory_space<vmem>>, vector<1x1x32xf32>
    %15 = arith.index_cast %c1_i32 : i32 to index
    %c0_6 = arith.constant 0 : index
    %c0_7 = arith.constant 0 : index
    %16 = vector.load %arg3[%15, %c0_6, %c0_7] : memref<4x2x32xf32, #tpu.memory_space<vmem>>, vector<1x1x32xf32>
    tpu.vector_store %arg3[%15, %c0_6, %c0_7], %14 {strides = array<i32>} : memref<4x2x32xf32, #tpu.memory_space<vmem>>, vector<1x1x32xf32>,
    %c2_i32_8 = arith.constant 2 : i32
    %17 = arith.addi %2, %c2_i32_8 : i32
    %18 = arith.index_cast %17 : i32 to index
    %19 = memref.load %arg1[%18] : memref<8xi32, #tpu.memory_space<smem>>
    %20 = arith.index_cast %19 : i32 to index
    %c0_9 = arith.constant 0 : index
    %c0_10 = arith.constant 0 : index
    %21 = vector.load %arg2[%20, %c0_9, %c0_10] : memref<16x2x32xf32, #tpu.memory_space<vmem>>, vector<1x1x32xf32>
    %22 = arith.index_cast %c2_i32_8 : i32 to index
    %c0_11 = arith.constant 0 : index
    %c0_12 = arith.constant 0 : index
    %23 = vector.load %arg3[%22, %c0_11, %c0_12] : memref<4x2x32xf32, #tpu.memory_space<vmem>>, vector<1x1x32xf32>
    tpu.vector_store %arg3[%22, %c0_11, %c0_12], %21 {strides = array<i32>} : memref<4x2x32xf32, #tpu.memory_space<vmem>>, vector<1x1x32xf32>,
    %c3_i32 = arith.constant 3 : i32
    %24 = arith.addi %2, %c3_i32 : i32
    %25 = arith.index_cast %24 : i32 to index
    %26 = memref.load %arg1[%25] : memref<8xi32, #tpu.memory_space<smem>>
    %27 = arith.index_cast %26 : i32 to index
    %c0_13 = arith.constant 0 : index
    %c0_14 = arith.constant 0 : index
    %28 = vector.load %arg2[%27, %c0_13, %c0_14] : memref<16x2x32xf32, #tpu.memory_space<vmem>>, vector<1x1x32xf32>
    %29 = arith.index_cast %c3_i32 : i32 to index
    %c0_15 = arith.constant 0 : index
    %c0_16 = arith.constant 0 : index
    %30 = vector.load %arg3[%29, %c0_15, %c0_16] : memref<4x2x32xf32, #tpu.memory_space<vmem>>, vector<1x1x32xf32>
    tpu.vector_store %arg3[%29, %c0_15, %c0_16], %28 {strides = array<i32>} : memref<4x2x32xf32, #tpu.memory_space<vmem>>, vector<1x1x32xf32>,
    %c4_i32_17 = arith.constant 4 : i32
    %c1_i32_18 = arith.constant 1 : i32
    %31 = arith.addi %0, %c1_i32_18 : i32
    %c4_i32_19 = arith.constant 4 : i32
    %32 = arith.muli %31, %c4_i32_19 : i32
    %c0_i32_20 = arith.constant 0 : i32
    %33 = arith.addi %32, %c0_i32_20 : i32
    %34 = arith.index_cast %33 : i32 to index
    %35 = memref.load %arg1[%34] : memref<8xi32, #tpu.memory_space<smem>>
    %36 = arith.index_cast %35 : i32 to index
    %c1 = arith.constant 1 : index
    %c0_21 = arith.constant 0 : index
    %37 = vector.load %arg2[%36, %c1, %c0_21] : memref<16x2x32xf32, #tpu.memory_space<vmem>>, vector<1x1x32xf32>
    %38 = arith.index_cast %c0_i32_20 : i32 to index
    %c1_22 = arith.constant 1 : index
    %c0_23 = arith.constant 0 : index
    %39 = vector.load %arg3[%38, %c1_22, %c0_23] : memref<4x2x32xf32, #tpu.memory_space<vmem>>, vector<1x1x32xf32>
    tpu.vector_store %arg3[%38, %c1_22, %c0_23], %37 {strides = array<i32>} : memref<4x2x32xf32, #tpu.memory_space<vmem>>, vector<1x1x32xf32>,
    %c1_i32_24 = arith.constant 1 : i32
    %40 = arith.addi %32, %c1_i32_24 : i32
    %41 = arith.index_cast %40 : i32 to index
    %42 = memref.load %arg1[%41] : memref<8xi32, #tpu.memory_space<smem>>
    %43 = arith.index_cast %42 : i32 to index
    %c1_25 = arith.constant 1 : index
    %c0_26 = arith.constant 0 : index
    %44 = vector.load %arg2[%43, %c1_25, %c0_26] : memref<16x2x32xf32, #tpu.memory_space<vmem>>, vector<1x1x32xf32>
    %45 = arith.index_cast %c1_i32_24 : i32 to index
    %c1_27 = arith.constant 1 : index
    %c0_28 = arith.constant 0 : index
    %46 = vector.load %arg3[%45, %c1_27, %c0_28] : memref<4x2x32xf32, #tpu.memory_space<vmem>>, vector<1x1x32xf32>
    tpu.vector_store %arg3[%45, %c1_27, %c0_28], %44 {strides = array<i32>} : memref<4x2x32xf32, #tpu.memory_space<vmem>>, vector<1x1x32xf32>,
    %c2_i32_29 = arith.constant 2 : i32
    %47 = arith.addi %32, %c2_i32_29 : i32
    %48 = arith.index_cast %47 : i32 to index
    %49 = memref.load %arg1[%48] : memref<8xi32, #tpu.memory_space<smem>>
    %50 = arith.index_cast %49 : i32 to index
    %c1_30 = arith.constant 1 : index
    %c0_31 = arith.constant 0 : index
    %51 = vector.load %arg2[%50, %c1_30, %c0_31] : memref<16x2x32xf32, #tpu.memory_space<vmem>>, vector<1x1x32xf32>
    %52 = arith.index_cast %c2_i32_29 : i32 to index
    %c1_32 = arith.constant 1 : index
    %c0_33 = arith.constant 0 : index
    %53 = vector.load %arg3[%52, %c1_32, %c0_33] : memref<4x2x32xf32, #tpu.memory_space<vmem>>, vector<1x1x32xf32>
    tpu.vector_store %arg3[%52, %c1_32, %c0_33], %51 {strides = array<i32>} : memref<4x2x32xf32, #tpu.memory_space<vmem>>, vector<1x1x32xf32>,
    %c3_i32_34 = arith.constant 3 : i32
    %54 = arith.addi %32, %c3_i32_34 : i32
    %55 = arith.index_cast %54 : i32 to index
    %56 = memref.load %arg1[%55] : memref<8xi32, #tpu.memory_space<smem>>
    %57 = arith.index_cast %56 : i32 to index
    %c1_35 = arith.constant 1 : index
    %c0_36 = arith.constant 0 : index
    %58 = vector.load %arg2[%57, %c1_35, %c0_36] : memref<16x2x32xf32, #tpu.memory_space<vmem>>, vector<1x1x32xf32>
    %59 = arith.index_cast %c3_i32_34 : i32 to index
    %c1_37 = arith.constant 1 : index
    %c0_38 = arith.constant 0 : index
    %60 = vector.load %arg3[%59, %c1_37, %c0_38] : memref<4x2x32xf32, #tpu.memory_space<vmem>>, vector<1x1x32xf32>
    tpu.vector_store %arg3[%59, %c1_37, %c0_38], %58 {strides = array<i32>} : memref<4x2x32xf32, #tpu.memory_space<vmem>>, vector<1x1x32xf32>,
    %c4_i32_39 = arith.constant 4 : i32
    return
  }
  func.func @transform_0(%arg0: i32, %arg1: memref<8xi32, #tpu.memory_space<smem>>) -> (i32, i32, i32) {
    %c0_i32 = arith.constant 0 : i32
    %c0_i32_0 = arith.constant 0 : i32
    %c0_i32_1 = arith.constant 0 : i32
    return %c0_i32, %arg0, %c0_i32_0 : i32, i32, i32
  }
  func.func @transform_1(%arg0: i32, %arg1: memref<8xi32, #tpu.memory_space<smem>>) -> (i32, i32, i32) {
    %c0_i32 = arith.constant 0 : i32
    %c0_i32_0 = arith.constant 0 : i32
    %c0_i32_1 = arith.constant 0 : i32
    return %c0_i32, %arg0, %c0_i32_0 : i32, i32, i32
  }
}

</mosaic_0001>

<llo_original>
// kernel: _patch_shuffle_impl.1
$region0: #{_patch_shuffle_impl.1}
  #allocation0 [shape = 'u32[]', space=smem, size = 0x4, offset = 0x4, fixed_abs, tag = 'smem constant byte address 0x4 - core index']
  #allocation1 [shape = 'u32[144,128]{1,0:T(1,128)}', space=vmem, size = 0x12000, scoped, tag = 'internal scratch']
  #allocation2 [shape = 's32[1]{0}', space=sflag, size = 0x4, scoped, tag = 'scoped memory for _patch_shuffle_impl.1']
  #allocation3 [shape = 'u8[512]{0}', space=smem, size = 0x200, scoped, tag = 'prefetched SMEM operand 0']
  %s0 = inlined_call_operand.vmem [shape: s32[8], index: 0, kind: input, shape index: {}]
  %s1 = inlined_call_operand.vmem [shape: f32[16,2,32], index: 1, kind: input, shape index: {}]
  %s2 = inlined_call_operand.hbm [shape: f32[4,2,32], index: 2, kind: output, shape index: {}]
  %s3 = sld [smem:[#allocation0]]
  $region14: #{_patch_shuffle_impl.1} parent=0
    _
  %s5 = ssub.s32 1, %s3
  %s6 = scalar_select 0, %s5, %s3
  %s7 = sshll.u32 %s0, 4
  %s8 = int_to_ptr.vmem [resolvable:$true] %s7
  %10 = dma.vmem_to_smem %s8, 16, [#allocation3], [#allocation2]
  %11 = dma.done [#allocation2], 16
  %12 = sfence
  $region1: #{_patch_shuffle_impl.1} parent=0
    #allocation4 [shape = 'u8[4096]{0}', space=vmem, size = 0x1000, scoped, tag = 'output window, operand 0, single buffered']
    #allocation5 [shape = 's32[1]{0}', space=sflag, size = 0x4, scoped, tag = 'scoped memory for _patch_shuffle_impl.1']
    %13 = vsyncpa [#allocation5], 0
    // Predicated region
    $region2: #{_patch_shuffle_impl.1} parent=1 // pred_check
      _
    $region3: #{_patch_shuffle_impl.1} parent=1 // pred_check_branch
      %15 = sbr.rel (0) target = $region5
    $region4: #{_patch_shuffle_impl.1} parent=1 // pred_region
      _
    $region5: #{_patch_shuffle_impl.1} parent=1 // pred_fallthru
      _
    %s16 = smul.u32 0, 2
    %s17 = smul.u32 0, 8
    %s18 = sld [smem:[#allocation3 + %s17]]
    %s19 = smul.u32 %s18, 2
    %s20 = scalar_lea.vmem %s1, %s19
    %v21 = vld [vmem:[%s20] sm:$0x1]
    %vm22 = vcmask 253952
    %23 = vst.msk [vmem:[#allocation4] sm:$0x1] %vm22, %v21
    %s24 = sadd.s32 %s17, 1
    %s25 = sld [smem:[#allocation3 + %s24]]
    %s26 = smul.u32 %s25, 2
    %s27 = scalar_lea.vmem %s1, %s26
    %v28 = vld [vmem:[%s27] sm:$0x1]
    %s29 = scalar_lea.vmem [#allocation4], 2
    %30 = vst.msk [vmem:[%s29] sm:$0x1] %vm22, %v28
    %s31 = sadd.s32 %s17, 2
    %s32 = sld [smem:[#allocation3 + %s31]]
    %s33 = smul.u32 %s32, 2
    %s34 = scalar_lea.vmem %s1, %s33
    %v35 = vld [vmem:[%s34] sm:$0x1]
    %s36 = scalar_lea.vmem [#allocation4], 4
    %37 = vst.msk [vmem:[%s36] sm:$0x1] %vm22, %v35
    %s38 = sadd.s32 %s17, 3
    %s39 = sld [smem:[#allocation3 + %s38]]
    %s40 = smul.u32 %s39, 2
    %s41 = scalar_lea.vmem %s1, %s40
    %v42 = vld [vmem:[%s41] sm:$0x1]
    %s43 = scalar_lea.vmem [#allocation4], 6
    %44 = vst.msk [vmem:[%s43] sm:$0x1] %vm22, %v42
    %s45 = sadd.s32 %s16, 1
    %s46 = smul.u32 %s45, 4
    %s47 = sld [smem:[#allocation3 + %s46]]
    %s48 = smul.u32 %s47, 2
    %s49 = scalar_lea.vmem %s1, %s48
    %v50 = vld [vmem:[%s49 + $0x1] sm:$0x1]
    %51 = vst.msk [vmem:[#allocation4 + $0x1] sm:$0x1] %vm22, %v50
    %s52 = sadd.s32 %s46, 1
    %s53 = sld [smem:[#allocation3 + %s52]]
    %s54 = smul.u32 %s53, 2
    %s55 = scalar_lea.vmem %s1, %s54
    %v56 = vld [vmem:[%s55 + $0x1] sm:$0x1]
    %57 = vst.msk [vmem:[%s29 + $0x1] sm:$0x1] %vm22, %v56
    %s58 = sadd.s32 %s46, 2
    %s59 = sld [smem:[#allocation3 + %s58]]
    %s60 = smul.u32 %s59, 2
    %s61 = scalar_lea.vmem %s1, %s60
    %v62 = vld [vmem:[%s61 + $0x1] sm:$0x1]
    %63 = vst.msk [vmem:[%s36 + $0x1] sm:$0x1] %vm22, %v62
    %s64 = sadd.s32 %s46, 3
    %s65 = sld [smem:[#allocation3 + %s64]]
    %s66 = smul.u32 %s65, 2
    %s67 = scalar_lea.vmem %s1, %s66
    %v68 = vld [vmem:[%s67 + $0x1] sm:$0x1]
    %69 = vst.msk [vmem:[%s43 + $0x1] sm:$0x1] %vm22, %v68
    // Predicated region
    $region6: #{_patch_shuffle_impl.1} parent=1 // pred_check
      _
    $region7: #{_patch_shuffle_impl.1} parent=1 // pred_check_branch
      %71 = sbr.rel (0) target = $region9
    $region8: #{_patch_shuffle_impl.1} parent=1 // pred_region
      %s73 = ssub.s32 128, 128
      %74 = vsyncadd [#allocation5], %s73
      %s75 = sshll.u32 [#allocation4], 4
      %s76 = int_to_ptr.vmem [resolvable:$true] %s75
      %81 = dma.vmem_to_hbm [thread:$0]  %s76, 128, %s2, [#allocation5], 32, 32, 2
    $region9: #{_patch_shuffle_impl.1} parent=1 // pred_fallthru
      _
    // Predicated region
    $region10: #{_patch_shuffle_impl.1} parent=1 // pred_check
      _
    $region11: #{_patch_shuffle_impl.1} parent=1 // pred_check_branch
      %83 = sbr.rel (0) target = $region13
    $region12: #{_patch_shuffle_impl.1} parent=1 // pred_region
      %84 = dma.done [#allocation5], 128
    $region13: #{_patch_shuffle_impl.1} parent=1 // pred_fallthru
      _
    %85 = vsyncpa [#allocation5], 1

</llo_original>
